<compile_context>
chip_gen: v7x
topology: tpu7x:2x2x1
jax: 0.10.0
libtpu: 0.0.40
codegen_flags: <defaults>
</compile_context>

<pallas_src>
import functools

import jax
import jax.numpy as jnp
from jax.experimental import pallas as pl
from jax.experimental.pallas import tpu as pltpu

_HAS_BUFFERED = hasattr(pl, "Buffered")


# ----------------------------------------------------------------------------
# Kernels
# ----------------------------------------------------------------------------
def _kernel_pos(x_ref, w_ref, b_ref, m_ref, pos_ref, o_ref, *, bb, seg,
                compute_dtype):
    """(relu(x@W + b) + relu_pos) * mask; pos broadcast over the bb batch axis."""
    h = jnp.dot(x_ref[...].astype(compute_dtype), w_ref[...],
                preferred_element_type=jnp.float32)
    h = jnp.maximum(h + b_ref[...], 0.0)                      # Linear + ReLU
    dh = h.shape[-1]
    # (tm, Dh) -> (bb, seg, Dh): tile-aligned split (seg % 8 == 0), no relayout.
    h = (h.reshape(bb, seg, dh) + pos_ref[...]).reshape(bb * seg, dh)
    m = m_ref[...].astype(jnp.float32)                        # (tm, 1)
    o_ref[...] = (h * m).astype(o_ref.dtype)


def _kernel_pos_tiled(x_ref, w_ref, b_ref, m_ref, pos_ref, o_ref, *,
                      compute_dtype):
    """Fallback variant: pos pre-tiled to the full (tm, Dh) row period."""
    h = jnp.dot(x_ref[...].astype(compute_dtype), w_ref[...],
                preferred_element_type=jnp.float32)
    h = jnp.maximum(h + b_ref[...], 0.0)
    m = m_ref[...].astype(jnp.float32)
    o_ref[...] = ((h + pos_ref[...]) * m).astype(o_ref.dtype)


def _kernel_nopos(x_ref, w_ref, b_ref, m_ref, o_ref, *, compute_dtype):
    h = jnp.dot(x_ref[...].astype(compute_dtype), w_ref[...],
                preferred_element_type=jnp.float32)
    h = jnp.maximum(h + b_ref[...], 0.0)
    m = m_ref[...].astype(jnp.float32)
    o_ref[...] = (h * m).astype(o_ref.dtype)


# ----------------------------------------------------------------------------
# Tile picking (VMEM-footprint aware)
# ----------------------------------------------------------------------------
def _pick_batches_per_tile(B, S_pad, Din, Dh_pad, *, target_rows, vmem_budget):
    """Largest divisor bb of B such that tm = bb*S_pad fits the row target and
    the (worst-case double-buffered) VMEM footprint fits the budget.  Keeps at
    least two grid steps when B allows, for megacore sharding on v7x."""

    def footprint(bb):
        tm = bb * S_pad
        x_b = 2 * tm * Din * 4              # f32 input tile, double-buffered
        o_b = 2 * tm * Dh_pad * 4           # f32 output tile, double-buffered
        m_b = 2 * tm * 128 * 4              # mask tile, lane-padded
        w_b = 2 * Din * Dh_pad * 2          # bf16 weight (worst case 2 bufs)
        p_b = 2 * S_pad * Dh_pad * 4        # pos block (worst case 2 bufs)
        b_b = 2 * 8 * Dh_pad * 4
        return x_b + o_b + m_b + w_b + p_b + b_b

    divisors = [d for d in range(1, B + 1) if B % d == 0]
    best = 1
    for bb in divisors:
        if bb * S_pad <= max(target_rows, S_pad) and footprint(bb) <= vmem_budget:
            best = max(best, bb)
    if best == B and B >= 2:
        # Prefer >= 2 grid steps: shards across both TensorCores on v7x and
        # lets the pipeline overlap DMA with compute.
        best = max(d for d in divisors if d < B)
    return best


# ----------------------------------------------------------------------------
# Wrapper
# ----------------------------------------------------------------------------
def lgi_video_encoder(seg_feats, seg_masks, params, *, position_encoding=True,
                      target_rows=1024, compute_dtype=jnp.bfloat16,
                      vmem_budget_bytes=24 << 20):
    """Pallas implementation of LGIVideoEncoder.forward (eval mode).

    seg_feats: [B, S, Din]
    seg_masks: [B, S]
    params: dict with 'w' [Din, Dh], 'b' [Dh],
            'pos' [video_segment_num, Dh] (only used if position_encoding)
    Returns seg_emb: [B, S, Dh] float32.
    """
    B, S, Din = seg_feats.shape
    Dh = params["w"].shape[1]
    Dh_pad = pl.cdiv(Dh, 128) * 128     # lane-dense output width
    S_pad = pl.cdiv(S, 8) * 8           # sublane-aligned segment dim

    # Pad segments so every row tile is 8-row aligned and row r of a tile maps
    # to segment r % S_pad.  Padded rows carry mask 0 -> output 0, sliced off.
    if S_pad != S:
        seg_feats = jnp.pad(seg_feats, ((0, 0), (0, S_pad - S), (0, 0)))
        seg_masks = jnp.pad(seg_masks, ((0, 0), (0, S_pad - S)))

    # Small, one-time parameter preps (bf16 weight for the MXU; f32 bias).
    w = params["w"].astype(compute_dtype)
    b = params["b"].reshape(1, Dh).astype(jnp.float32)
    if Dh_pad != Dh:
        w = jnp.pad(w, ((0, 0), (0, Dh_pad - Dh)))
        b = jnp.pad(b, ((0, 0), (0, Dh_pad - Dh)))

    relu_pos = None
    if position_encoding:
        relu_pos = jnp.maximum(params["pos"][:S].astype(jnp.float32), 0.0)
        if Dh_pad != Dh:
            relu_pos = jnp.pad(relu_pos, ((0, 0), (0, Dh_pad - Dh)))
        if S_pad != S:
            relu_pos = jnp.pad(relu_pos, ((0, S_pad - S), (0, 0)))

    # Free leading-dim collapse; no wrapper-side cast of the big activation.
    x2 = seg_feats.reshape(B * S_pad, Din)
    m2 = seg_masks.reshape(B * S_pad, 1)

    bb = _pick_batches_per_tile(B, S_pad, Din, Dh_pad,
                                target_rows=target_rows,
                                vmem_budget=vmem_budget_bytes)
    tm = bb * S_pad
    grid = (B // bb,)

    out_shape = jax.ShapeDtypeStruct((B * S_pad, Dh_pad), jnp.float32)
    cparams = pltpu.CompilerParams(
        dimension_semantics=("parallel",),
        vmem_limit_bytes=48 << 20,   # covers budget on v5e (16 MiB default) and fits v7x's 64 MiB
    )
    cost = pl.CostEstimate(
        flops=2 * B * S_pad * Din * Dh_pad,
        transcendentals=0,
        bytes_accessed=(4 * B * S_pad * Din
                        + int(w.dtype.itemsize) * Din * Dh_pad
                        + 4 * B * S_pad * Dh_pad
                        + int(m2.dtype.itemsize) * B * S_pad
                        + 4 * S_pad * Dh_pad),
    )

    def _resident(shape, single_buffer):
        # Grid-invariant block: constant index_map; single-buffer when possible.
        if single_buffer and _HAS_BUFFERED:
            return pl.BlockSpec(shape, lambda i: (0, 0),
                                pipeline_mode=pl.Buffered(buffer_count=1))
        return pl.BlockSpec(shape, lambda i: (0, 0))

    def _run(single_buffer, broadcast_pos):
        x_spec = pl.BlockSpec((tm, Din), lambda i: (i, 0))
        m_spec = pl.BlockSpec((tm, 1), lambda i: (i, 0))
        o_spec = pl.BlockSpec((tm, Dh_pad), lambda i: (i, 0))
        w_spec = _resident((Din, Dh_pad), single_buffer)
        b_spec = _resident((1, Dh_pad), single_buffer)

        if not position_encoding:
            kernel = functools.partial(_kernel_nopos, compute_dtype=compute_dtype)
            in_specs = [x_spec, w_spec, b_spec, m_spec]
            args = (x2, w, b, m2)
        elif broadcast_pos:
            kernel = functools.partial(_kernel_pos, bb=bb, seg=S_pad,
                                       compute_dtype=compute_dtype)
            pos_spec = _resident((S_pad, Dh_pad), single_buffer)
            in_specs = [x_spec, w_spec, b_spec, m_spec, pos_spec]
            args = (x2, w, b, m2, relu_pos)
        else:
            kernel = functools.partial(_kernel_pos_tiled,
                                       compute_dtype=compute_dtype)
            pos_tile = jnp.tile(relu_pos, (bb, 1))        # (tm, Dh_pad)
            pos_spec = _resident((tm, Dh_pad), single_buffer)
            in_specs = [x_spec, w_spec, b_spec, m_spec, pos_spec]
            args = (x2, w, b, m2, pos_tile)

        out = pl.pallas_call(
            kernel,
            out_shape=out_shape,
            grid_spec=pltpu.PrefetchScalarGridSpec(
                num_scalar_prefetch=0,
                grid=grid,
                in_specs=in_specs,
                out_specs=o_spec,
            ),
            compiler_params=cparams,
            cost_estimate=cost,
        )(*args)
        return jax.block_until_ready(out)

    try:
        out = _run(single_buffer=True, broadcast_pos=True)
    except Exception:
        # Conservative fallback: no pipeline_mode on residents, pre-tiled pos
        # (no in-kernel split reshape).  Still uses bf16 MXU operands.
        out = _run(single_buffer=False, broadcast_pos=False)

    out = out.reshape(B, S_pad, Dh_pad)
    if S_pad != S:
        out = out[:, :S, :]
    if Dh_pad != Dh:
        out = out[:, :, :Dh]
    return out


# ----------------------------------------------------------------------------
# Plain-JAX reference (mirrors the PyTorch forward in eval mode, f32 math)
# ----------------------------------------------------------------------------
def _reference(seg_feats, seg_masks, params, *, position_encoding=True):
    h = jnp.maximum(seg_feats @ params["w"] + params["b"], 0.0)
    m = seg_masks.astype(jnp.float32)[..., None]
    seg = h * m
    if position_encoding:
        S = seg_masks.shape[1]
        pos_emb = jnp.maximum(params["pos"][:S], 0.0)   # [S, Dh]
        seg = seg + pos_emb[None] * m
    return seg


# ----------------------------------------------------------------------------
# Test
# ----------------------------------------------------------------------------
if __name__ == "__main__":
    key = jax.random.PRNGKey(0)
    # bf16 MXU operands vs f32 reference -> loosened tolerance.
    TOL = dict(atol=5e-2, rtol=5e-2)

    # --- Test 1: tiny shapes (Dh < 128 exercises the pad/slice path) -------
    B, S = 2, 8
    Din, Dh = 32, 32
    k1, k2, k3, k4, key = jax.random.split(key, 5)
    params = {
        "w": jax.random.normal(k1, (Din, Dh), dtype=jnp.float32) * 0.1,
        "b": jax.random.normal(k2, (Dh,), dtype=jnp.float32) * 0.1,
        "pos": jax.random.normal(k3, (S, Dh), dtype=jnp.float32) * 0.1,
    }
    seg_feats = jax.random.normal(k4, (B, S, Din), dtype=jnp.float32)
    seg_masks = jnp.ones((B, S), dtype=jnp.float32).at[1, S - 2:].set(0.0)

    out = jax.block_until_ready(
        lgi_video_encoder(seg_feats, seg_masks, params, position_encoding=True))
    ref = _reference(seg_feats, seg_masks, params, position_encoding=True)
    assert out.shape == (B, S, Dh)
    assert jnp.allclose(out, ref, **TOL), "mismatch vs reference (pos)"

    out2 = jax.block_until_ready(
        lgi_video_encoder(seg_feats, seg_masks, params, position_encoding=False))
    ref2 = _reference(seg_feats, seg_masks, params, position_encoding=False)
    assert jnp.allclose(out2, ref2, **TOL), "mismatch vs reference (nopos)"

    # --- Test 2: multi-tile grid (B*S > tile), lane-aligned Dh --------------
    B2, S2 = 8, 128
    Din2, Dh2 = 128, 128
    k1, k2, k3, k4, key = jax.random.split(key, 5)
    params2 = {
        "w": jax.random.normal(k1, (Din2, Dh2), dtype=jnp.float32) * 0.1,
        "b": jax.random.normal(k2, (Dh2,), dtype=jnp.float32) * 0.1,
        "pos": jax.random.normal(k3, (S2, Dh2), dtype=jnp.float32) * 0.1,
    }
    seg_feats2 = jax.random.normal(k4, (B2, S2, Din2), dtype=jnp.float32)
    seg_masks2 = jnp.ones((B2, S2), dtype=jnp.float32)
    seg_masks2 = seg_masks2.at[3, 100:].set(0.0).at[7, 64:].set(0.0)

    out3 = jax.block_until_ready(
        lgi_video_encoder(seg_feats2, seg_masks2, params2, position_encoding=True))
    ref3 = _reference(seg_feats2, seg_masks2, params2, position_encoding=True)
    assert out3.shape == (B2, S2, Dh2)
    assert jnp.allclose(out3, ref3, **TOL), "mismatch vs reference (big)"

    # --- Test 3: awkward S (not a multiple of 8) exercises the S-pad path ---
    B3, S3 = 3, 5
    Din3, Dh3 = 32, 48
    k1, k2, k3, k4, key = jax.random.split(key, 5)
    params3 = {
        "w": jax.random.normal(k1, (Din3, Dh3), dtype=jnp.float32) * 0.1,
        "b": jax.random.normal(k2, (Dh3,), dtype=jnp.float32) * 0.1,
        "pos": jax.random.normal(k3, (S3, Dh3), dtype=jnp.float32) * 0.1,
    }
    seg_feats3 = jax.random.normal(k4, (B3, S3, Din3), dtype=jnp.float32)
    seg_masks3 = jnp.ones((B3, S3), dtype=jnp.float32).at[0, 3:].set(0.0)

    out4 = jax.block_until_ready(
        lgi_video_encoder(seg_feats3, seg_masks3, params3, position_encoding=True))
    ref4 = _reference(seg_feats3, seg_masks3, params3, position_encoding=True)
    assert out4.shape == (B3, S3, Dh3)
    assert jnp.allclose(out4, ref4, **TOL), "mismatch vs reference (awkward S)"

    print("KERNEL_OK")
</pallas_src>

<mosaic_0001>
module attributes {stable_mosaic.version = 11 : i64} {
  func.func @_kernel_pos(%arg0: i32, %arg1: memref<8x32xf32, #tpu.memory_space<vmem>>, %arg2: memref<32x128xbf16, #tpu.memory_space<vmem>>, %arg3: memref<1x128xf32, #tpu.memory_space<vmem>>, %arg4: memref<8x1xf32, #tpu.memory_space<vmem>>, %arg5: memref<8x128xf32, #tpu.memory_space<vmem>>, %arg6: memref<8x128xf32, #tpu.memory_space<vmem>>) attributes {dimension_semantics = [#tpu.dimension_semantics<parallel>], iteration_bounds = array<i64: 2>, scalar_prefetch = 0 : i64, scratch_operands = 0 : i64, tpu.core_type = #tpu.core_type<tc>, window_params = [{transform_indices = @transform_0, window_bounds = array<i64: 8, 32>}, {pipeline_mode = #tpu.pipeline_mode<synchronous>, transform_indices = @transform_1, window_bounds = array<i64: 32, 128>}, {pipeline_mode = #tpu.pipeline_mode<synchronous>, transform_indices = @transform_2, window_bounds = array<i64: 1, 128>}, {transform_indices = @transform_3, window_bounds = array<i64: 8, 1>}, {pipeline_mode = #tpu.pipeline_mode<synchronous>, transform_indices = @transform_4, window_bounds = array<i64: 8, 128>}, {transform_indices = @transform_5, window_bounds = array<i64: 8, 128>}]} {
    %c0 = arith.constant 0 : index
    %c0_0 = arith.constant 0 : index
    %0 = vector.load %arg1[%c0, %c0_0] : memref<8x32xf32, #tpu.memory_space<vmem>>, vector<8x32xf32>
    %1 = arith.truncf %0 : vector<8x32xf32> to vector<8x32xbf16>
    %c0_1 = arith.constant 0 : index
    %c0_2 = arith.constant 0 : index
    %2 = vector.load %arg2[%c0_1, %c0_2] : memref<32x128xbf16, #tpu.memory_space<vmem>>, vector<32x128xbf16>
    %cst = arith.constant dense<0.000000e+00> : vector<8x128xf32>
    %3 = tpu.matmul %1, %2, %cst {dimension_numbers = #tpu.dot_dimension_numbers<[1], [0], [0], [1], [0, 0, 1, 1], [], []>} : vector<8x32xbf16>, vector<32x128xbf16>, vector<8x128xf32> -> vector<8x128xf32>
    %c0_3 = arith.constant 0 : index
    %c0_4 = arith.constant 0 : index
    %4 = vector.load %arg3[%c0_3, %c0_4] : memref<1x128xf32, #tpu.memory_space<vmem>>, vector<1x128xf32>
    %5 = vector.broadcast %4 : vector<1x128xf32> to vector<8x128xf32>
    %6 = arith.addf %3, %5 : vector<8x128xf32>
    %cst_5 = arith.constant 0.000000e+00 : f32
    %7 = vector.broadcast %cst_5 : f32 to vector<8x128xf32>
    %8 = arith.maximumf %6, %7 : vector<8x128xf32>
    %9 = vector.shape_cast %8 : vector<8x128xf32> to vector<1x8x128xf32>
    %c0_6 = arith.constant 0 : index
    %c0_7 = arith.constant 0 : index
    %10 = vector.load %arg5[%c0_6, %c0_7] : memref<8x128xf32, #tpu.memory_space<vmem>>, vector<8x128xf32>
    %11 = vector.shape_cast %10 : vector<8x128xf32> to vector<1x8x128xf32>
    %12 = arith.addf %9, %11 : vector<1x8x128xf32>
    %13 = vector.shape_cast %12 : vector<1x8x128xf32> to vector<8x128xf32>
    %c0_8 = arith.constant 0 : index
    %c0_9 = arith.constant 0 : index
    %14 = vector.load %arg4[%c0_8, %c0_9] : memref<8x1xf32, #tpu.memory_space<vmem>>, vector<8x1xf32>
    %15 = vector.broadcast %14 : vector<8x1xf32> to vector<8x128xf32>
    %16 = arith.mulf %13, %15 : vector<8x128xf32>
    %c0_10 = arith.constant 0 : index
    %c0_11 = arith.constant 0 : index
    %17 = vector.load %arg6[%c0_10, %c0_11] : memref<8x128xf32, #tpu.memory_space<vmem>>, vector<8x128xf32>
    tpu.vector_store %arg6[%c0_10, %c0_11], %16 {strides = array<i32>} : memref<8x128xf32, #tpu.memory_space<vmem>>, vector<8x128xf32>,
    return
  }
  func.func @transform_0(%arg0: i32) -> (i32, i32) {
    %c0_i32 = arith.constant 0 : i32
    %c0_i32_0 = arith.constant 0 : i32
    return %arg0, %c0_i32 : i32, i32
  }
  func.func @transform_1(%arg0: i32) -> (i32, i32) {
    %c0_i32 = arith.constant 0 : i32
    %c0_i32_0 = arith.constant 0 : i32
    %c0_i32_1 = arith.constant 0 : i32
    return %c0_i32, %c0_i32_0 : i32, i32
  }
  func.func @transform_2(%arg0: i32) -> (i32, i32) {
    %c0_i32 = arith.constant 0 : i32
    %c0_i32_0 = arith.constant 0 : i32
    %c0_i32_1 = arith.constant 0 : i32
    return %c0_i32, %c0_i32_0 : i32, i32
  }
  func.func @transform_3(%arg0: i32) -> (i32, i32) {
    %c0_i32 = arith.constant 0 : i32
    %c0_i32_0 = arith.constant 0 : i32
    return %arg0, %c0_i32 : i32, i32
  }
  func.func @transform_4(%arg0: i32) -> (i32, i32) {
    %c0_i32 = arith.constant 0 : i32
    %c0_i32_0 = arith.constant 0 : i32
    %c0_i32_1 = arith.constant 0 : i32
    return %c0_i32, %c0_i32_0 : i32, i32
  }
  func.func @transform_5(%arg0: i32) -> (i32, i32) {
    %c0_i32 = arith.constant 0 : i32
    %c0_i32_0 = arith.constant 0 : i32
    return %arg0, %c0_i32 : i32, i32
  }
}

module attributes {stable_mosaic.version = 11 : i64} {
  func.func @_kernel_pos_tiled(%arg0: i32, %arg1: memref<8x32xf32, #tpu.memory_space<vmem>>, %arg2: memref<32x128xbf16, #tpu.memory_space<vmem>>, %arg3: memref<1x128xf32, #tpu.memory_space<vmem>>, %arg4: memref<8x1xf32, #tpu.memory_space<vmem>>, %arg5: memref<8x128xf32, #tpu.memory_space<vmem>>, %arg6: memref<8x128xf32, #tpu.memory_space<vmem>>) attributes {dimension_semantics = [#tpu.dimension_semantics<parallel>], iteration_bounds = array<i64: 2>, scalar_prefetch = 0 : i64, scratch_operands = 0 : i64, tpu.core_type = #tpu.core_type<tc>, window_params = [{transform_indices = @transform_0, window_bounds = array<i64: 8, 32>}, {pipeline_mode = #tpu.pipeline_mode<synchronous>, transform_indices = @transform_1, window_bounds = array<i64: 32, 128>}, {pipeline_mode = #tpu.pipeline_mode<synchronous>, transform_indices = @transform_2, window_bounds = array<i64: 1, 128>}, {transform_indices = @transform_3, window_bounds = array<i64: 8, 1>}, {pipeline_mode = #tpu.pipeline_mode<synchronous>, transform_indices = @transform_4, window_bounds = array<i64: 8, 128>}, {transform_indices = @transform_5, window_bounds = array<i64: 8, 128>}]} {
    %c0 = arith.constant 0 : index
    %c0_0 = arith.constant 0 : index
    %0 = vector.load %arg1[%c0, %c0_0] : memref<8x32xf32, #tpu.memory_space<vmem>>, vector<8x32xf32>
    %1 = arith.truncf %0 : vector<8x32xf32> to vector<8x32xbf16>
    %c0_1 = arith.constant 0 : index
    %c0_2 = arith.constant 0 : index
    %2 = vector.load %arg2[%c0_1, %c0_2] : memref<32x128xbf16, #tpu.memory_space<vmem>>, vector<32x128xbf16>
    %cst = arith.constant dense<0.000000e+00> : vector<8x128xf32>
    %3 = tpu.matmul %1, %2, %cst {dimension_numbers = #tpu.dot_dimension_numbers<[1], [0], [0], [1], [0, 0, 1, 1], [], []>} : vector<8x32xbf16>, vector<32x128xbf16>, vector<8x128xf32> -> vector<8x128xf32>
    %c0_3 = arith.constant 0 : index
    %c0_4 = arith.constant 0 : index
    %4 = vector.load %arg3[%c0_3, %c0_4] : memref<1x128xf32, #tpu.memory_space<vmem>>, vector<1x128xf32>
    %5 = vector.broadcast %4 : vector<1x128xf32> to vector<8x128xf32>
    %6 = arith.addf %3, %5 : vector<8x128xf32>
    %cst_5 = arith.constant 0.000000e+00 : f32
    %7 = vector.broadcast %cst_5 : f32 to vector<8x128xf32>
    %8 = arith.maximumf %6, %7 : vector<8x128xf32>
    %c0_6 = arith.constant 0 : index
    %c0_7 = arith.constant 0 : index
    %9 = vector.load %arg4[%c0_6, %c0_7] : memref<8x1xf32, #tpu.memory_space<vmem>>, vector<8x1xf32>
    %c0_8 = arith.constant 0 : index
    %c0_9 = arith.constant 0 : index
    %10 = vector.load %arg5[%c0_8, %c0_9] : memref<8x128xf32, #tpu.memory_space<vmem>>, vector<8x128xf32>
    %11 = arith.addf %8, %10 : vector<8x128xf32>
    %12 = vector.broadcast %9 : vector<8x1xf32> to vector<8x128xf32>
    %13 = arith.mulf %11, %12 : vector<8x128xf32>
    %c0_10 = arith.constant 0 : index
    %c0_11 = arith.constant 0 : index
    %14 = vector.load %arg6[%c0_10, %c0_11] : memref<8x128xf32, #tpu.memory_space<vmem>>, vector<8x128xf32>
    tpu.vector_store %arg6[%c0_10, %c0_11], %13 {strides = array<i32>} : memref<8x128xf32, #tpu.memory_space<vmem>>, vector<8x128xf32>,
    return
  }
  func.func @transform_0(%arg0: i32) -> (i32, i32) {
    %c0_i32 = arith.constant 0 : i32
    %c0_i32_0 = arith.constant 0 : i32
    return %arg0, %c0_i32 : i32, i32
  }
  func.func @transform_1(%arg0: i32) -> (i32, i32) {
    %c0_i32 = arith.constant 0 : i32
    %c0_i32_0 = arith.constant 0 : i32
    %c0_i32_1 = arith.constant 0 : i32
    return %c0_i32, %c0_i32_0 : i32, i32
  }
  func.func @transform_2(%arg0: i32) -> (i32, i32) {
    %c0_i32 = arith.constant 0 : i32
    %c0_i32_0 = arith.constant 0 : i32
    %c0_i32_1 = arith.constant 0 : i32
    return %c0_i32, %c0_i32_0 : i32, i32
  }
  func.func @transform_3(%arg0: i32) -> (i32, i32) {
    %c0_i32 = arith.constant 0 : i32
    %c0_i32_0 = arith.constant 0 : i32
    return %arg0, %c0_i32 : i32, i32
  }
  func.func @transform_4(%arg0: i32) -> (i32, i32) {
    %c0_i32 = arith.constant 0 : i32
    %c0_i32_0 = arith.constant 0 : i32
    %c0_i32_1 = arith.constant 0 : i32
    return %c0_i32, %c0_i32_0 : i32, i32
  }
  func.func @transform_5(%arg0: i32) -> (i32, i32) {
    %c0_i32 = arith.constant 0 : i32
    %c0_i32_0 = arith.constant 0 : i32
    return %arg0, %c0_i32 : i32, i32
  }
}

</mosaic_0001>

<llo_original>
// kernel: tpu_custom_call.1
$region0: #{tpu_custom_call.1}
  #allocation0 [shape = 'u32[]', space=smem, size = 0x4, offset = 0x4, fixed_abs, tag = 'smem constant byte address 0x4 - core index']
  #allocation1 [shape = 'u32[144,128]{1,0:T(1,128)}', space=vmem, size = 0x12000, scoped, tag = 'internal scratch']
  %s0 = inlined_call_operand.vmem [shape: f32[16,32], index: 0, kind: input, shape index: {}]
  %s1 = inlined_call_operand.hbm [shape: bf16[32,128], index: 1, kind: input, shape index: {}]
  %s2 = inlined_call_operand.hbm [shape: f32[1,128], index: 2, kind: input, shape index: {}]
  %s3 = inlined_call_operand.vmem [shape: f32[16,1], index: 3, kind: input, shape index: {}]
  %s4 = inlined_call_operand.vmem [shape: f32[8,128], index: 4, kind: input, shape index: {}]
  %s5 = inlined_call_operand.hbm [shape: f32[16,128], index: 5, kind: output, shape index: {}]
  %s6 = sld [smem:[#allocation0]]
  $region61: #{tpu_custom_call.1} parent=0
    _
  %s8 = ssub.s32 1, %s6
  %s9 = scalar_select 0, %s8, %s6
  $region1: #{tpu_custom_call.1} parent=0
    #allocation2 [shape = 'u8[8192]{0}', space=vmem, size = 0x2000, scoped, tag = 'input window, operand 1, single buffered']
    #allocation3 [shape = 's32[2]{0}', space=sflag, size = 0x8, scoped, tag = 'scoped memory for tpu_custom_call.1']
    #allocation4 [shape = 's32[2]{0}', space=sflag, size = 0x8, scoped, tag = 'scoped memory for tpu_custom_call.1']
    #allocation5 [shape = 'u8[512]{0}', space=vmem, size = 0x400, scoped, tag = 'input window, operand 2, single buffered']
    #allocation6 [shape = 's32[1]{0}', space=sflag, size = 0x4, scoped, tag = 'scoped memory for tpu_custom_call.1']
    #allocation7 [shape = 'u8[8192]{0}', space=vmem, size = 0x2000, scoped, tag = 'output window, operand 0']
    %10 = vsyncpa [#allocation3], 0
    %11 = vsyncpa [#allocation6], 0
    %12 = vsyncpa [#allocation4], 0
    %s13 = scalar_lea.sflag [#allocation4], 1
    %14 = vsyncpa %s13, 0
    loop: start=0, step=1, limit=4
    $region2: #{tpu_custom_call.1} parent=1 // loop_pre_header
      _
    $region3: #{tpu_custom_call.1} parent=1 // loop_header
      %s16 = sphi 0, %s20
      %p17 = scmp.ge.s32.totalorder %s16, 4
      %s26 = sphi 0, %s28
      %s29 = sphi 0, %s26
      %s30 = sphi 0, %s29
      %s46 = sphi 0, %s30
      %s50 = sphi 0, %s50
      %s52 = sphi 0, %s50
      %s53 = sphi 0, %s52
      %s67 = sphi 0, %s53
      %s71 = sphi 0, %s71
      %s73 = sphi 0, %s71
      %s74 = sphi 0, %s73
      %s88 = sphi 0, %s74
      %s94 = sphi 0, %s96
      %s97 = sphi 0, %s94
      %s98 = sphi 0, %s97
      %s114 = sphi 0, %s98
      %s118 = sphi 0, %s118
      %s120 = sphi 0, %s118
      %s121 = sphi 0, %s120
      %s135 = sphi 0, %s121
      %s141 = sphi 0, %s143
      %s144 = sphi 0, %s141
      %s145 = sphi 0, %s144
      %s161 = sphi 0, %s145
    $region4: #{tpu_custom_call.1} parent=1 // loop_header_branch
      %19 = sbr.rel (%p17) target = $region8
    $region5: #{tpu_custom_call.1} parent=1 // loop_body
      %s21 = ssub.s32 %s16, 1
      %s22 = ssub.s32 %s16, 2
      %s23 = sadd.s32 %s16, 1
      %s24 = ssub.s32 %s16, %s23
      %p25 = scmp.eq.s32.totalorder %s24, 0
      %s27 = sadd.s32 %s26, 1
      %s28 = scalar_select %p25, %s26, %s27
      %p31 = pneg %p25
      %p32 = scmp.eq.s32.totalorder %s16, 1
      %p33 = por %p31, %p32
      %p34 = scmp.ne.s32.totalorder %s26, %s29
      %p35 = scmp.eq.s32.totalorder %s16, 0
      %p36 = por %p34, %p35
      %p37 = scmp.ne.s32.totalorder %s26, %s29
      %p38 = scmp.eq.s32.totalorder %s21, 1
      %p39 = por %p37, %p38
      %p40 = scmp.ne.s32.totalorder %s29, %s30
      %p41 = scmp.eq.s32.totalorder %s21, 0
      %p42 = por %p40, %p41
      %p43 = scmp.ne.s32.totalorder %s29, %s30
      %p44 = scmp.eq.s32.totalorder %s22, 1
      %p45 = por %p43, %p44
      %p47 = scmp.ne.s32.totalorder %s30, %s46
      %p48 = scmp.eq.s32.totalorder %s22, 0
      %p49 = por %p47, %p48
      %s51 = sadd.s32 %s50, 1
      %p54 = scmp.eq.s32.totalorder %s16, 1
      %p55 = scmp.ne.s32.totalorder %s50, %s52
      %p56 = scmp.eq.s32.totalorder %s16, 0
      %p57 = por %p55, %p56
      %p58 = scmp.ne.s32.totalorder %s50, %s52
      %p59 = scmp.eq.s32.totalorder %s21, 1
      %p60 = por %p58, %p59
      %p61 = scmp.ne.s32.totalorder %s52, %s53
      %p62 = scmp.eq.s32.totalorder %s21, 0
      %p63 = por %p61, %p62
      %p64 = scmp.ne.s32.totalorder %s52, %s53
      %p65 = scmp.eq.s32.totalorder %s22, 1
      %p66 = por %p64, %p65
      %p68 = scmp.ne.s32.totalorder %s53, %s67
      %p69 = scmp.eq.s32.totalorder %s22, 0
      %p70 = por %p68, %p69
      %s72 = sadd.s32 %s71, 1
      %p75 = scmp.eq.s32.totalorder %s16, 1
      %p76 = scmp.ne.s32.totalorder %s71, %s73
      %p77 = scmp.eq.s32.totalorder %s16, 0
      %p78 = por %p76, %p77
      %p79 = scmp.ne.s32.totalorder %s71, %s73
      %p80 = scmp.eq.s32.totalorder %s21, 1
      %p81 = por %p79, %p80
      %p82 = scmp.ne.s32.totalorder %s73, %s74
      %p83 = scmp.eq.s32.totalorder %s21, 0
      %p84 = por %p82, %p83
      %p85 = scmp.ne.s32.totalorder %s73, %s74
      %p86 = scmp.eq.s32.totalorder %s22, 1
      %p87 = por %p85, %p86
      %p89 = scmp.ne.s32.totalorder %s74, %s88
      %p90 = scmp.eq.s32.totalorder %s22, 0
      %p91 = por %p89, %p90
      %s92 = ssub.s32 %s16, %s23
      %p93 = scmp.eq.s32.totalorder %s92, 0
      %s95 = sadd.s32 %s94, 1
      %s96 = scalar_select %p93, %s94, %s95
      %p99 = pneg %p93
      %p100 = scmp.eq.s32.totalorder %s16, 1
      %p101 = por %p99, %p100
      %p102 = scmp.ne.s32.totalorder %s94, %s97
      %p103 = scmp.eq.s32.totalorder %s16, 0
      %p104 = por %p102, %p103
      %p105 = scmp.ne.s32.totalorder %s94, %s97
      %p106 = scmp.eq.s32.totalorder %s21, 1
      %p107 = por %p105, %p106
      %p108 = scmp.ne.s32.totalorder %s97, %s98
      %p109 = scmp.eq.s32.totalorder %s21, 0
      %p110 = por %p108, %p109
      %p111 = scmp.ne.s32.totalorder %s97, %s98
      %p112 = scmp.eq.s32.totalorder %s22, 1
      %p113 = por %p111, %p112
      %p115 = scmp.ne.s32.totalorder %s98, %s114
      %p116 = scmp.eq.s32.totalorder %s22, 0
      %p117 = por %p115, %p116
      %s119 = sadd.s32 %s118, 1
      %p122 = scmp.eq.s32.totalorder %s16, 1
      %p123 = scmp.ne.s32.totalorder %s118, %s120
      %p124 = scmp.eq.s32.totalorder %s16, 0
      %p125 = por %p123, %p124
      %p126 = scmp.ne.s32.totalorder %s118, %s120
      %p127 = scmp.eq.s32.totalorder %s21, 1
      %p128 = por %p126, %p127
      %p129 = scmp.ne.s32.totalorder %s120, %s121
      %p130 = scmp.eq.s32.totalorder %s21, 0
      %p131 = por %p129, %p130
      %p132 = scmp.ne.s32.totalorder %s120, %s121
      %p133 = scmp.eq.s32.totalorder %s22, 1
      %p134 = por %p132, %p133
      %p136 = scmp.ne.s32.totalorder %s121, %s135
      %p137 = scmp.eq.s32.totalorder %s22, 0
      %p138 = por %p136, %p137
      %s139 = ssub.s32 %s16, %s23
      %p140 = scmp.eq.s32.totalorder %s139, 0
      %s142 = sadd.s32 %s141, 1
      %s143 = scalar_select %p140, %s141, %s142
      %p146 = pneg %p140
      %p147 = scmp.eq.s32.totalorder %s16, 1
      %p148 = por %p146, %p147
      %p149 = scmp.ne.s32.totalorder %s141, %s144
      %p150 = scmp.eq.s32.totalorder %s16, 0
      %p151 = por %p149, %p150
      %p152 = scmp.ne.s32.totalorder %s141, %s144
      %p153 = scmp.eq.s32.totalorder %s21, 1
      %p154 = por %p152, %p153
      %p155 = scmp.ne.s32.totalorder %s144, %s145
      %p156 = scmp.eq.s32.totalorder %s21, 0
      %p157 = por %p155, %p156
      %p158 = scmp.ne.s32.totalorder %s144, %s145
      %p159 = scmp.eq.s32.totalorder %s22, 1
      %p160 = por %p158, %p159
      %p162 = scmp.ne.s32.totalorder %s145, %s161
      %p163 = scmp.eq.s32.totalorder %s22, 0
      %p164 = por %p162, %p163
      %p165 = scmp.le.s32.totalorder 1, %s16
      %p166 = scmp.lt.s32.totalorder %s16, 3
      %p167 = pnand %p165, %p166
      %p168 = pneg %p167
      // Predicated region
      $region9: #{tpu_custom_call.1} parent=5 // pred_check
        _
      $region10: #{tpu_custom_call.1} parent=5 // pred_check_branch
        %170 = sbr.rel (%p167) target = $region12
      $region11: #{tpu_custom_call.1} parent=5 // pred_region
        %s171 = ssub.s32 %s16, 1
        // Predicated region
        $region13: #{tpu_custom_call.1} parent=11 // pred_check
          %p172 = pneg %p63
        $region14: #{tpu_custom_call.1} parent=11 // pred_check_branch
          %174 = sbr.rel (%p172) target = $region16
        $region15: #{tpu_custom_call.1} parent=11 // pred_region
          %s176 = ssub.s32 256, 256
          %177 = vsyncadd [#allocation3], %s176
          %s178 = sshll.u32 [#allocation2], 4
          %s179 = int_to_ptr.vmem [resolvable:$true] %s178
          %184 = dma.hbm_to_vmem [thread:$0]  %s1, 256, %s179, [#allocation3], 64, 64, 4
        $region16: #{tpu_custom_call.1} parent=11 // pred_fallthru
          _
        // Predicated region
        $region17: #{tpu_custom_call.1} parent=11 // pred_check
          %p185 = pneg %p84
        $region18: #{tpu_custom_call.1} parent=11 // pred_check_branch
          %187 = sbr.rel (%p185) target = $region20
        $region19: #{tpu_custom_call.1} parent=11 // pred_region
          %s189 = ssub.s32 16, 16
          %190 = vsyncadd [#allocation6], %s189
          %s192 = sshll.u32 [#allocation5], 4
          %s193 = int_to_ptr.vmem [resolvable:$true] %s192
          %195 = dma.hbm_to_vmem [thread:$0]  %s2, 16, %s193, [#allocation6]
        $region20: #{tpu_custom_call.1} parent=11 // pred_fallthru
          _
        // Predicated region
        $region21: #{tpu_custom_call.1} parent=11 // pred_check
          %p196 = pneg %p131
        $region22: #{tpu_custom_call.1} parent=11 // pred_check_branch
          %198 = sbr.rel (%p196) target = $region24
        $region23: #{tpu_custom_call.1} parent=11 // pred_region
          _
        $region24: #{tpu_custom_call.1} parent=11 // pred_fallthru
          _
      $region12: #{tpu_custom_call.1} parent=5 // pred_fallthru
        _
      %p199 = scmp.lt.s32.totalorder %s16, 2
      // Predicated region
      $region25: #{tpu_custom_call.1} parent=5 // pred_check
        %p200 = pneg %p199
      $region26: #{tpu_custom_call.1} parent=5 // pred_check_branch
        %202 = sbr.rel (%p200) target = $region28
      $region27: #{tpu_custom_call.1} parent=5 // pred_region
        // Predicated region
        $region29: #{tpu_custom_call.1} parent=27 // pred_check
          %p203 = pneg %p36
        $region30: #{tpu_custom_call.1} parent=27 // pred_check_branch
          %205 = sbr.rel (%p203) target = $region32
        $region31: #{tpu_custom_call.1} parent=27 // pred_region
          %p206 = scmp.lt.s32.totalorder %s16, 1
          %s207 = scalar_select %p206, %s16, 1
          %s208 = smul.addr %s207, 8
          %s209 = scalar_lea.vmem %s0, %s208
        $region32: #{tpu_custom_call.1} parent=27 // pred_fallthru
          _
        // Predicated region
        $region33: #{tpu_custom_call.1} parent=27 // pred_check
          %p210 = pneg %p104
        $region34: #{tpu_custom_call.1} parent=27 // pred_check_branch
          %212 = sbr.rel (%p210) target = $region36
        $region35: #{tpu_custom_call.1} parent=27 // pred_region
          %p213 = scmp.lt.s32.totalorder %s16, 1
          %s214 = scalar_select %p213, %s16, 1
          %s215 = smul.addr %s214, 8
          %s216 = scalar_lea.vmem %s3, %s215
        $region36: #{tpu_custom_call.1} parent=27 // pred_fallthru
          _
      $region28: #{tpu_custom_call.1} parent=5 // pred_fallthru
        _
      %p217 = scmp.le.s32.totalorder 1, %s16
      %p218 = scmp.lt.s32.totalorder %s16, 3
      %p219 = pnand %p217, %p218
      %p220 = pneg %p219
      // Predicated region
      $region37: #{tpu_custom_call.1} parent=5 // pred_check
        _
      $region38: #{tpu_custom_call.1} parent=5 // pred_check_branch
        %222 = sbr.rel (%p219) target = $region40
      $region39: #{tpu_custom_call.1} parent=5 // pred_region
        %s223 = ssub.s32 %s16, 1
        // Predicated region
        $region41: #{tpu_custom_call.1} parent=39 // pred_check
          %p224 = pneg %p63
        $region42: #{tpu_custom_call.1} parent=39 // pred_check_branch
          %226 = sbr.rel (%p224) target = $region44
        $region43: #{tpu_custom_call.1} parent=39 // pred_region
          %227 = dma.done [#allocation3], 256
        $region44: #{tpu_custom_call.1} parent=39 // pred_fallthru
          _
        // Predicated region
        $region45: #{tpu_custom_call.1} parent=39 // pred_check
          %p228 = pneg %p84
        $region46: #{tpu_custom_call.1} parent=39 // pred_check_branch
          %230 = sbr.rel (%p228) target = $region48
        $region47: #{tpu_custom_call.1} parent=39 // pred_region
          %231 = dma.done [#allocation6], 16
        $region48: #{tpu_custom_call.1} parent=39 // pred_fallthru
          _
        %p232 = scmp.lt.s32.totalorder %s21, 1
        %s233 = scalar_select %p232, %s21, 1
        %s234 = smul.addr %s233, 8
        %s235 = scalar_lea.vmem %s0, %s234
        %p236 = pneg %p42
        %p237 = pneg %p39
        %p238 = pneg %p63
        %p239 = pneg %p60
        %p240 = pneg %p84
        %p241 = pneg %p81
        %p242 = scmp.lt.s32.totalorder %s21, 1
        %s243 = scalar_select %p242, %s21, 1
        %s244 = smul.addr %s243, 8
        %s245 = scalar_lea.vmem %s3, %s244
        %p246 = pneg %p110
        %p247 = pneg %p107
        %p248 = pneg %p131
        %p249 = pneg %p128
        %p250 = pneg %p157
        %p251 = pneg %p154
        %s252 = sand.u32 %s144, 1
        %s253 = scalar_lea.sflag [#allocation4], %s252
        %s254 = sand.u32 %s144, 1
        %s255 = smul.addr %s254, 8
        %s256 = scalar_lea.vmem [#allocation7], %s255
        %p257 = scmp.lt.s32.totalorder %s21, 1
        %s258 = scalar_select %p257, %s21, 1
        %s259 = smul.addr %s258, 8
        %s260 = scalar_lea.vmem %s0, %s259
        %p261 = scmp.lt.s32.totalorder %s21, 1
        %s262 = scalar_select %p261, %s21, 1
        %s263 = smul.addr %s262, 8
        %s264 = scalar_lea.vmem %s3, %s263
        %v266 = vld [vmem:[%s260] sm:$0xff]
        %v267 = vpack.c.bf16 %v266, %v266
        %v268 = vld [vmem:[#allocation2] sm:$0xf]
        %v269 = vld [vmem:[#allocation2 + $0x4] sm:$0xf]
        %v270 = vld [vmem:[#allocation2 + $0x8] sm:$0xf]
        %v271 = vld [vmem:[#allocation2 + $0xc] sm:$0xf]
        %v272 = vld [vmem:[#allocation5] sm:$0x1]
        %v274 = vlaneseq
        %v275 = vshrl.u32 %v274, 7
        %v276 = vsub.s32 0, %v275
        %v277 = vrot.slane %v272, %v276
        %v283 = vunpack.c.l.b16 %v268
        %v284 = vunpack.c.l.b16 %v269
        %v285 = vunpack.c.l.b16 %v270
        %v286 = vunpack.c.l.b16 %v271
        %v287 = vpack.c.b16 %v284, %v283
        %v288 = vpack.c.b16 %v286, %v285
        %vm291 = vcmask 261120
        %v293 = vsel %vm291, %v267, 0
        %295 = vmatprep.subr.bf16.mxu0 0
        %296 = vmatpush1.bf16.msra.mxu0 %v287
        %297 = vmatprep.subr.bf16.mxu0 0
        %298 = vmatpush1.bf16.msra.mxu0 %v288
        %299 = vmatprep.subr.bf16.mxu0 0
        %300 = vmatpush1.bf16.msra.mxu0 0
        %301 = vmatprep.subr.bf16.mxu0 0
        %302 = vmatpush1.bf16.msra.mxu0 0
        %303 = vmatprep.subr.bf16.mxu0 0
        %304 = vmatpush1.bf16.msra.mxu0 0
        %305 = vmatprep.subr.bf16.mxu0 0
        %306 = vmatpush1.bf16.msra.mxu0 0
        %307 = vmatprep.subr.bf16.mxu0 0
        %308 = vmatpush1.bf16.msra.mxu0 0
        %309 = vmatprep.subr.bf16.mxu0 0
        %310 = vmatpush1.bf16.msra.mxu0 0
        %311 = vmatprep.subr.bf16.mxu0 0
        %312 = vmatpush1.bf16.msra.mxu0 0
        %313 = vmatprep.subr.bf16.mxu0 0
        %314 = vmatpush1.bf16.msra.mxu0 0
        %315 = vmatprep.subr.bf16.mxu0 0
        %316 = vmatpush1.bf16.msra.mxu0 0
        %317 = vmatprep.subr.bf16.mxu0 0
        %318 = vmatpush1.bf16.msra.mxu0 0
        %319 = vmatprep.subr.bf16.mxu0 0
        %320 = vmatpush1.bf16.msra.mxu0 0
        %321 = vmatprep.subr.bf16.mxu0 0
        %322 = vmatpush1.bf16.msra.mxu0 0
        %323 = vmatprep.subr.bf16.mxu0 0
        %324 = vmatpush1.bf16.msra.mxu0 0
        %325 = vmatprep.subr.bf16.mxu0 0
        %326 = vmatpush1.bf16.msra.mxu0 0
        %327 = vmatprep.mubr.bf16.mxu0 0
        %328 = vmatmul.mubr.bf16.gmra.mrb[0].mxu0 %v293
        %v329 = vpop.f32.mrb[0].mxu0
        %v330 = vadd.f32 %v277, %v329
        %v331 = vpop.f32.mrb[0].mxu0
        %v332 = vpop.f32.mrb[0].mxu0
        %v333 = vpop.f32.mrb[0].mxu0
        %334 = vdwg.mxu0
        %v335 = vmax.f32 %v330, 0.0
        %v336 = vld [vmem:[%s4] sm:$0xff]
        %v337 = vadd.f32 %v335, %v336
        %v338 = vld [vmem:[%s264] sm:$0xff]
        %340 = vset.pattern.permute.xlu0 0
        %341 = vperm.xlu0 %340, %v338
        %v342 = vpop.permute.xlu0 %341
        %v344 = vmul.f32 %v337, %v342
        %345 = vst [vmem:[%s256] sm:$0xff] %v344
        %s346 = sand.u32 %s144, 1
        %s347 = scalar_lea.sflag [#allocation4], %s346
        %s348 = sand.u32 %s144, 1
        %s349 = smul.addr %s348, 8
        %s350 = scalar_lea.vmem [#allocation7], %s349
        // Predicated region
        $region49: #{tpu_custom_call.1} parent=39 // pred_check
          %p351 = pneg %p154
        $region50: #{tpu_custom_call.1} parent=39 // pred_check_branch
          %353 = sbr.rel (%p351) target = $region52
        $region51: #{tpu_custom_call.1} parent=39 // pred_region
          %s355 = ssub.s32 128, 128
          %356 = vsyncadd %s347, %s355
          %s357 = smul.addr %s21, 128
          %s358 = scalar_lea.hbm %s5, %s357
          %s360 = sshll.u32 %s350, 4
          %s361 = int_to_ptr.vmem [resolvable:$true] %s360
          %363 = dma.vmem_to_hbm [thread:$0]  %s361, 128, %s358, %s347
        $region52: #{tpu_custom_call.1} parent=39 // pred_fallthru
          _
      $region40: #{tpu_custom_call.1} parent=5 // pred_fallthru
        _
      %p364 = scmp.le.s32.totalorder 2, %s16
      // Predicated region
      $region53: #{tpu_custom_call.1} parent=5 // pred_check
        %p365 = pneg %p364
      $region54: #{tpu_custom_call.1} parent=5 // pred_check_branch
        %367 = sbr.rel (%p365) target = $region56
      $region55: #{tpu_custom_call.1} parent=5 // pred_region
        %s368 = ssub.s32 %s16, 2
        // Predicated region
        $region57: #{tpu_custom_call.1} parent=55 // pred_check
          %p369 = pneg %p160
        $region58: #{tpu_custom_call.1} parent=55 // pred_check_branch
          %371 = sbr.rel (%p369) target = $region60
        $region59: #{tpu_custom_call.1} parent=55 // pred_region
          %s372 = sand.u32 %s145, 1
          %s373 = scalar_lea.sflag [#allocation4], %s372
          %s374 = sand.u32 %s145, 1
          %s375 = smul.addr %s374, 8
          %s376 = scalar_lea.vmem [#allocation7], %s375
          %377 = dma.done %s373, 128
        $region60: #{tpu_custom_call.1} parent=55 // pred_fallthru
          _
      $region56: #{tpu_custom_call.1} parent=5 // pred_fallthru
        _
    $region6: #{tpu_custom_call.1} parent=1 // loop_footer
      %s20 = sadd.s32 1, %s16
    $region7: #{tpu_custom_call.1} parent=1 // loop_footer_branch
      %15 = sbr.rel target = $region3
    $region8: #{tpu_custom_call.1} parent=1 // loop_exit
      _
    %378 = vsyncpa [#allocation3], 1
    %s379 = scalar_lea.sflag [#allocation3], 1
    %380 = vsyncpa %s379, 1
    %381 = vsyncpa [#allocation6], 1
    %382 = vsyncpa [#allocation4], 1
    %s383 = scalar_lea.sflag [#allocation4], 1
    %384 = vsyncpa %s383, 1

// kernel: tpu_custom_call.1
$region0: #{tpu_custom_call.1}
  #allocation0 [shape = 'u32[]', space=smem, size = 0x4, offset = 0x4, fixed_abs, tag = 'smem constant byte address 0x4 - core index']
  #allocation1 [shape = 'u32[144,128]{1,0:T(1,128)}', space=vmem, size = 0x12000, scoped, tag = 'internal scratch']
  %s0 = inlined_call_operand.vmem [shape: f32[16,32], index: 0, kind: input, shape index: {}]
  %s1 = inlined_call_operand.hbm [shape: bf16[32,128], index: 1, kind: input, shape index: {}]
  %s2 = inlined_call_operand.hbm [shape: f32[1,128], index: 2, kind: input, shape index: {}]
  %s3 = inlined_call_operand.vmem [shape: f32[16,1], index: 3, kind: input, shape index: {}]
  %s4 = inlined_call_operand.vmem [shape: f32[8,128], index: 4, kind: input, shape index: {}]
  %s5 = inlined_call_operand.hbm [shape: f32[16,128], index: 5, kind: output, shape index: {}]
  %s6 = sld [smem:[#allocation0]]
  $region61: #{tpu_custom_call.1} parent=0
    _
  %s8 = ssub.s32 1, %s6
  %s9 = scalar_select 0, %s8, %s6
  $region1: #{tpu_custom_call.1} parent=0
    #allocation2 [shape = 'u8[8192]{0}', space=vmem, size = 0x2000, scoped, tag = 'input window, operand 1, single buffered']
    #allocation3 [shape = 's32[2]{0}', space=sflag, size = 0x8, scoped, tag = 'scoped memory for tpu_custom_call.1']
    #allocation4 [shape = 's32[2]{0}', space=sflag, size = 0x8, scoped, tag = 'scoped memory for tpu_custom_call.1']
    #allocation5 [shape = 'u8[512]{0}', space=vmem, size = 0x400, scoped, tag = 'input window, operand 2, single buffered']
    #allocation6 [shape = 's32[1]{0}', space=sflag, size = 0x4, scoped, tag = 'scoped memory for tpu_custom_call.1']
    #allocation7 [shape = 'u8[8192]{0}', space=vmem, size = 0x2000, scoped, tag = 'output window, operand 0']
    %10 = vsyncpa [#allocation3], 0
    %11 = vsyncpa [#allocation6], 0
    %12 = vsyncpa [#allocation4], 0
    %s13 = scalar_lea.sflag [#allocation4], 1
    %14 = vsyncpa %s13, 0
    loop: start=0, step=1, limit=4
    $region2: #{tpu_custom_call.1} parent=1 // loop_pre_header
      _
    $region3: #{tpu_custom_call.1} parent=1 // loop_header
      %s16 = sphi 0, %s20
      %p17 = scmp.ge.s32.totalorder %s16, 4
      %s26 = sphi 0, %s28
      %s29 = sphi 0, %s26
      %s30 = sphi 0, %s29
      %s46 = sphi 0, %s30
      %s50 = sphi 0, %s50
      %s52 = sphi 0, %s50
      %s53 = sphi 0, %s52
      %s67 = sphi 0, %s53
      %s71 = sphi 0, %s71
      %s73 = sphi 0, %s71
      %s74 = sphi 0, %s73
      %s88 = sphi 0, %s74
      %s94 = sphi 0, %s96
      %s97 = sphi 0, %s94
      %s98 = sphi 0, %s97
      %s114 = sphi 0, %s98
      %s118 = sphi 0, %s118
      %s120 = sphi 0, %s118
      %s121 = sphi 0, %s120
      %s135 = sphi 0, %s121
      %s141 = sphi 0, %s143
      %s144 = sphi 0, %s141
      %s145 = sphi 0, %s144
      %s161 = sphi 0, %s145
    $region4: #{tpu_custom_call.1} parent=1 // loop_header_branch
      %19 = sbr.rel (%p17) target = $region8
    $region5: #{tpu_custom_call.1} parent=1 // loop_body
      %s21 = ssub.s32 %s16, 1
      %s22 = ssub.s32 %s16, 2
      %s23 = sadd.s32 %s16, 1
      %s24 = ssub.s32 %s16, %s23
      %p25 = scmp.eq.s32.totalorder %s24, 0
      %s27 = sadd.s32 %s26, 1
      %s28 = scalar_select %p25, %s26, %s27
      %p31 = pneg %p25
      %p32 = scmp.eq.s32.totalorder %s16, 1
      %p33 = por %p31, %p32
      %p34 = scmp.ne.s32.totalorder %s26, %s29
      %p35 = scmp.eq.s32.totalorder %s16, 0
      %p36 = por %p34, %p35
      %p37 = scmp.ne.s32.totalorder %s26, %s29
      %p38 = scmp.eq.s32.totalorder %s21, 1
      %p39 = por %p37, %p38
      %p40 = scmp.ne.s32.totalorder %s29, %s30
      %p41 = scmp.eq.s32.totalorder %s21, 0
      %p42 = por %p40, %p41
      %p43 = scmp.ne.s32.totalorder %s29, %s30
      %p44 = scmp.eq.s32.totalorder %s22, 1
      %p45 = por %p43, %p44
      %p47 = scmp.ne.s32.totalorder %s30, %s46
      %p48 = scmp.eq.s32.totalorder %s22, 0
      %p49 = por %p47, %p48
      %s51 = sadd.s32 %s50, 1
      %p54 = scmp.eq.s32.totalorder %s16, 1
      %p55 = scmp.ne.s32.totalorder %s50, %s52
      %p56 = scmp.eq.s32.totalorder %s16, 0
      %p57 = por %p55, %p56
      %p58 = scmp.ne.s32.totalorder %s50, %s52
      %p59 = scmp.eq.s32.totalorder %s21, 1
      %p60 = por %p58, %p59
      %p61 = scmp.ne.s32.totalorder %s52, %s53
      %p62 = scmp.eq.s32.totalorder %s21, 0
      %p63 = por %p61, %p62
      %p64 = scmp.ne.s32.totalorder %s52, %s53
      %p65 = scmp.eq.s32.totalorder %s22, 1
      %p66 = por %p64, %p65
      %p68 = scmp.ne.s32.totalorder %s53, %s67
      %p69 = scmp.eq.s32.totalorder %s22, 0
      %p70 = por %p68, %p69
      %s72 = sadd.s32 %s71, 1
      %p75 = scmp.eq.s32.totalorder %s16, 1
      %p76 = scmp.ne.s32.totalorder %s71, %s73
      %p77 = scmp.eq.s32.totalorder %s16, 0
      %p78 = por %p76, %p77
      %p79 = scmp.ne.s32.totalorder %s71, %s73
      %p80 = scmp.eq.s32.totalorder %s21, 1
      %p81 = por %p79, %p80
      %p82 = scmp.ne.s32.totalorder %s73, %s74
      %p83 = scmp.eq.s32.totalorder %s21, 0
      %p84 = por %p82, %p83
      %p85 = scmp.ne.s32.totalorder %s73, %s74
      %p86 = scmp.eq.s32.totalorder %s22, 1
      %p87 = por %p85, %p86
      %p89 = scmp.ne.s32.totalorder %s74, %s88
      %p90 = scmp.eq.s32.totalorder %s22, 0
      %p91 = por %p89, %p90
      %s92 = ssub.s32 %s16, %s23
      %p93 = scmp.eq.s32.totalorder %s92, 0
      %s95 = sadd.s32 %s94, 1
      %s96 = scalar_select %p93, %s94, %s95
      %p99 = pneg %p93
      %p100 = scmp.eq.s32.totalorder %s16, 1
      %p101 = por %p99, %p100
      %p102 = scmp.ne.s32.totalorder %s94, %s97
      %p103 = scmp.eq.s32.totalorder %s16, 0
      %p104 = por %p102, %p103
      %p105 = scmp.ne.s32.totalorder %s94, %s97
      %p106 = scmp.eq.s32.totalorder %s21, 1
      %p107 = por %p105, %p106
      %p108 = scmp.ne.s32.totalorder %s97, %s98
      %p109 = scmp.eq.s32.totalorder %s21, 0
      %p110 = por %p108, %p109
      %p111 = scmp.ne.s32.totalorder %s97, %s98
      %p112 = scmp.eq.s32.totalorder %s22, 1
      %p113 = por %p111, %p112
      %p115 = scmp.ne.s32.totalorder %s98, %s114
      %p116 = scmp.eq.s32.totalorder %s22, 0
      %p117 = por %p115, %p116
      %s119 = sadd.s32 %s118, 1
      %p122 = scmp.eq.s32.totalorder %s16, 1
      %p123 = scmp.ne.s32.totalorder %s118, %s120
      %p124 = scmp.eq.s32.totalorder %s16, 0
      %p125 = por %p123, %p124
      %p126 = scmp.ne.s32.totalorder %s118, %s120
      %p127 = scmp.eq.s32.totalorder %s21, 1
      %p128 = por %p126, %p127
      %p129 = scmp.ne.s32.totalorder %s120, %s121
      %p130 = scmp.eq.s32.totalorder %s21, 0
      %p131 = por %p129, %p130
      %p132 = scmp.ne.s32.totalorder %s120, %s121
      %p133 = scmp.eq.s32.totalorder %s22, 1
      %p134 = por %p132, %p133
      %p136 = scmp.ne.s32.totalorder %s121, %s135
      %p137 = scmp.eq.s32.totalorder %s22, 0
      %p138 = por %p136, %p137
      %s139 = ssub.s32 %s16, %s23
      %p140 = scmp.eq.s32.totalorder %s139, 0
      %s142 = sadd.s32 %s141, 1
      %s143 = scalar_select %p140, %s141, %s142
      %p146 = pneg %p140
      %p147 = scmp.eq.s32.totalorder %s16, 1
      %p148 = por %p146, %p147
      %p149 = scmp.ne.s32.totalorder %s141, %s144
      %p150 = scmp.eq.s32.totalorder %s16, 0
      %p151 = por %p149, %p150
      %p152 = scmp.ne.s32.totalorder %s141, %s144
      %p153 = scmp.eq.s32.totalorder %s21, 1
      %p154 = por %p152, %p153
      %p155 = scmp.ne.s32.totalorder %s144, %s145
      %p156 = scmp.eq.s32.totalorder %s21, 0
      %p157 = por %p155, %p156
      %p158 = scmp.ne.s32.totalorder %s144, %s145
      %p159 = scmp.eq.s32.totalorder %s22, 1
      %p160 = por %p158, %p159
      %p162 = scmp.ne.s32.totalorder %s145, %s161
      %p163 = scmp.eq.s32.totalorder %s22, 0
      %p164 = por %p162, %p163
      %p165 = scmp.le.s32.totalorder 1, %s16
      %p166 = scmp.lt.s32.totalorder %s16, 3
      %p167 = pnand %p165, %p166
      %p168 = pneg %p167
      // Predicated region
      $region9: #{tpu_custom_call.1} parent=5 // pred_check
        _
      $region10: #{tpu_custom_call.1} parent=5 // pred_check_branch
        %170 = sbr.rel (%p167) target = $region12
      $region11: #{tpu_custom_call.1} parent=5 // pred_region
        %s171 = ssub.s32 %s16, 1
        // Predicated region
        $region13: #{tpu_custom_call.1} parent=11 // pred_check
          %p172 = pneg %p63
        $region14: #{tpu_custom_call.1} parent=11 // pred_check_branch
          %174 = sbr.rel (%p172) target = $region16
        $region15: #{tpu_custom_call.1} parent=11 // pred_region
          %s176 = ssub.s32 256, 256
          %177 = vsyncadd [#allocation3], %s176
          %s178 = sshll.u32 [#allocation2], 4
          %s179 = int_to_ptr.vmem [resolvable:$true] %s178
          %184 = dma.hbm_to_vmem [thread:$0]  %s1, 256, %s179, [#allocation3], 64, 64, 4
        $region16: #{tpu_custom_call.1} parent=11 // pred_fallthru
          _
        // Predicated region
        $region17: #{tpu_custom_call.1} parent=11 // pred_check
          %p185 = pneg %p84
        $region18: #{tpu_custom_call.1} parent=11 // pred_check_branch
          %187 = sbr.rel (%p185) target = $region20
        $region19: #{tpu_custom_call.1} parent=11 // pred_region
          %s189 = ssub.s32 16, 16
          %190 = vsyncadd [#allocation6], %s189
          %s192 = sshll.u32 [#allocation5], 4
          %s193 = int_to_ptr.vmem [resolvable:$true] %s192
          %195 = dma.hbm_to_vmem [thread:$0]  %s2, 16, %s193, [#allocation6]
        $region20: #{tpu_custom_call.1} parent=11 // pred_fallthru
          _
        // Predicated region
        $region21: #{tpu_custom_call.1} parent=11 // pred_check
          %p196 = pneg %p131
        $region22: #{tpu_custom_call.1} parent=11 // pred_check_branch
          %198 = sbr.rel (%p196) target = $region24
        $region23: #{tpu_custom_call.1} parent=11 // pred_region
          _
        $region24: #{tpu_custom_call.1} parent=11 // pred_fallthru
          _
      $region12: #{tpu_custom_call.1} parent=5 // pred_fallthru
        _
      %p199 = scmp.lt.s32.totalorder %s16, 2
      // Predicated region
      $region25: #{tpu_custom_call.1} parent=5 // pred_check
        %p200 = pneg %p199
      $region26: #{tpu_custom_call.1} parent=5 // pred_check_branch
        %202 = sbr.rel (%p200) target = $region28
      $region27: #{tpu_custom_call.1} parent=5 // pred_region
        // Predicated region
        $region29: #{tpu_custom_call.1} parent=27 // pred_check
          %p203 = pneg %p36
        $region30: #{tpu_custom_call.1} parent=27 // pred_check_branch
          %205 = sbr.rel (%p203) target = $region32
        $region31: #{tpu_custom_call.1} parent=27 // pred_region
          %p206 = scmp.lt.s32.totalorder %s16, 1
          %s207 = scalar_select %p206, %s16, 1
          %s208 = smul.addr %s207, 8
          %s209 = scalar_lea.vmem %s0, %s208
        $region32: #{tpu_custom_call.1} parent=27 // pred_fallthru
          _
        // Predicated region
        $region33: #{tpu_custom_call.1} parent=27 // pred_check
          %p210 = pneg %p104
        $region34: #{tpu_custom_call.1} parent=27 // pred_check_branch
          %212 = sbr.rel (%p210) target = $region36
        $region35: #{tpu_custom_call.1} parent=27 // pred_region
          %p213 = scmp.lt.s32.totalorder %s16, 1
          %s214 = scalar_select %p213, %s16, 1
          %s215 = smul.addr %s214, 8
          %s216 = scalar_lea.vmem %s3, %s215
        $region36: #{tpu_custom_call.1} parent=27 // pred_fallthru
          _
      $region28: #{tpu_custom_call.1} parent=5 // pred_fallthru
        _
      %p217 = scmp.le.s32.totalorder 1, %s16
      %p218 = scmp.lt.s32.totalorder %s16, 3
      %p219 = pnand %p217, %p218
      %p220 = pneg %p219
      // Predicated region
      $region37: #{tpu_custom_call.1} parent=5 // pred_check
        _
      $region38: #{tpu_custom_call.1} parent=5 // pred_check_branch
        %222 = sbr.rel (%p219) target = $region40
      $region39: #{tpu_custom_call.1} parent=5 // pred_region
        %s223 = ssub.s32 %s16, 1
        // Predicated region
        $region41: #{tpu_custom_call.1} parent=39 // pred_check
          %p224 = pneg %p63
        $region42: #{tpu_custom_call.1} parent=39 // pred_check_branch
          %226 = sbr.rel (%p224) target = $region44
        $region43: #{tpu_custom_call.1} parent=39 // pred_region
          %227 = dma.done [#allocation3], 256
        $region44: #{tpu_custom_call.1} parent=39 // pred_fallthru
          _
        // Predicated region
        $region45: #{tpu_custom_call.1} parent=39 // pred_check
          %p228 = pneg %p84
        $region46: #{tpu_custom_call.1} parent=39 // pred_check_branch
          %230 = sbr.rel (%p228) target = $region48
        $region47: #{tpu_custom_call.1} parent=39 // pred_region
          %231 = dma.done [#allocation6], 16
        $region48: #{tpu_custom_call.1} parent=39 // pred_fallthru
          _
        %p232 = scmp.lt.s32.totalorder %s21, 1
        %s233 = scalar_select %p232, %s21, 1
        %s234 = smul.addr %s233, 8
        %s235 = scalar_lea.vmem %s0, %s234
        %p236 = pneg %p42
        %p237 = pneg %p39
        %p238 = pneg %p63
        %p239 = pneg %p60
        %p240 = pneg %p84
        %p241 = pneg %p81
        %p242 = scmp.lt.s32.totalorder %s21, 1
        %s243 = scalar_select %p242, %s21, 1
        %s244 = smul.addr %s243, 8
        %s245 = scalar_lea.vmem %s3, %s244
        %p246 = pneg %p110
        %p247 = pneg %p107
        %p248 = pneg %p131
        %p249 = pneg %p128
        %p250 = pneg %p157
        %p251 = pneg %p154
        %s252 = sand.u32 %s144, 1
        %s253 = scalar_lea.sflag [#allocation4], %s252
        %s254 = sand.u32 %s144, 1
        %s255 = smul.addr %s254, 8
        %s256 = scalar_lea.vmem [#allocation7], %s255
        %p257 = scmp.lt.s32.totalorder %s21, 1
        %s258 = scalar_select %p257, %s21, 1
        %s259 = smul.addr %s258, 8
        %s260 = scalar_lea.vmem %s0, %s259
        %p261 = scmp.lt.s32.totalorder %s21, 1
        %s262 = scalar_select %p261, %s21, 1
        %s263 = smul.addr %s262, 8
        %s264 = scalar_lea.vmem %s3, %s263
        %v266 = vld [vmem:[%s260] sm:$0xff]
        %v267 = vpack.c.bf16 %v266, %v266
        %v268 = vld [vmem:[#allocation2] sm:$0xf]
        %v269 = vld [vmem:[#allocation2 + $0x4] sm:$0xf]
        %v270 = vld [vmem:[#allocation2 + $0x8] sm:$0xf]
        %v271 = vld [vmem:[#allocation2 + $0xc] sm:$0xf]
        %v272 = vld [vmem:[#allocation5] sm:$0x1]
        %v274 = vlaneseq
        %v275 = vshrl.u32 %v274, 7
        %v276 = vsub.s32 0, %v275
        %v277 = vrot.slane %v272, %v276
        %v283 = vunpack.c.l.b16 %v268
        %v284 = vunpack.c.l.b16 %v269
        %v285 = vunpack.c.l.b16 %v270
        %v286 = vunpack.c.l.b16 %v271
        %v287 = vpack.c.b16 %v284, %v283
        %v288 = vpack.c.b16 %v286, %v285
        %vm291 = vcmask 261120
        %v293 = vsel %vm291, %v267, 0
        %295 = vmatprep.subr.bf16.mxu0 0
        %296 = vmatpush1.bf16.msra.mxu0 %v287
        %297 = vmatprep.subr.bf16.mxu0 0
        %298 = vmatpush1.bf16.msra.mxu0 %v288
        %299 = vmatprep.subr.bf16.mxu0 0
        %300 = vmatpush1.bf16.msra.mxu0 0
        %301 = vmatprep.subr.bf16.mxu0 0
        %302 = vmatpush1.bf16.msra.mxu0 0
        %303 = vmatprep.subr.bf16.mxu0 0
        %304 = vmatpush1.bf16.msra.mxu0 0
        %305 = vmatprep.subr.bf16.mxu0 0
        %306 = vmatpush1.bf16.msra.mxu0 0
        %307 = vmatprep.subr.bf16.mxu0 0
        %308 = vmatpush1.bf16.msra.mxu0 0
        %309 = vmatprep.subr.bf16.mxu0 0
        %310 = vmatpush1.bf16.msra.mxu0 0
        %311 = vmatprep.subr.bf16.mxu0 0
        %312 = vmatpush1.bf16.msra.mxu0 0
        %313 = vmatprep.subr.bf16.mxu0 0
        %314 = vmatpush1.bf16.msra.mxu0 0
        %315 = vmatprep.subr.bf16.mxu0 0
        %316 = vmatpush1.bf16.msra.mxu0 0
        %317 = vmatprep.subr.bf16.mxu0 0
        %318 = vmatpush1.bf16.msra.mxu0 0
        %319 = vmatprep.subr.bf16.mxu0 0
        %320 = vmatpush1.bf16.msra.mxu0 0
        %321 = vmatprep.subr.bf16.mxu0 0
        %322 = vmatpush1.bf16.msra.mxu0 0
        %323 = vmatprep.subr.bf16.mxu0 0
        %324 = vmatpush1.bf16.msra.mxu0 0
        %325 = vmatprep.subr.bf16.mxu0 0
        %326 = vmatpush1.bf16.msra.mxu0 0
        %327 = vmatprep.mubr.bf16.mxu0 0
        %328 = vmatmul.mubr.bf16.gmra.mrb[0].mxu0 %v293
        %v329 = vpop.f32.mrb[0].mxu0
        %v330 = vadd.f32 %v277, %v329
        %v331 = vpop.f32.mrb[0].mxu0
        %v332 = vpop.f32.mrb[0].mxu0
        %v333 = vpop.f32.mrb[0].mxu0
        %334 = vdwg.mxu0
        %v335 = vmax.f32 %v330, 0.0
        %v336 = vld [vmem:[%s264] sm:$0xff]
        %v337 = vld [vmem:[%s4] sm:$0xff]
        %v338 = vadd.f32 %v335, %v337
        %340 = vset.pattern.permute.xlu0 0
        %341 = vperm.xlu0 %340, %v336
        %v342 = vpop.permute.xlu0 %341
        %v344 = vmul.f32 %v338, %v342
        %345 = vst [vmem:[%s256] sm:$0xff] %v344
        %s346 = sand.u32 %s144, 1
        %s347 = scalar_lea.sflag [#allocation4], %s346
        %s348 = sand.u32 %s144, 1
        %s349 = smul.addr %s348, 8
        %s350 = scalar_lea.vmem [#allocation7], %s349
        // Predicated region
        $region49: #{tpu_custom_call.1} parent=39 // pred_check
          %p351 = pneg %p154
        $region50: #{tpu_custom_call.1} parent=39 // pred_check_branch
          %353 = sbr.rel (%p351) target = $region52
        $region51: #{tpu_custom_call.1} parent=39 // pred_region
          %s355 = ssub.s32 128, 128
          %356 = vsyncadd %s347, %s355
          %s357 = smul.addr %s21, 128
          %s358 = scalar_lea.hbm %s5, %s357
          %s360 = sshll.u32 %s350, 4
          %s361 = int_to_ptr.vmem [resolvable:$true] %s360
          %363 = dma.vmem_to_hbm [thread:$0]  %s361, 128, %s358, %s347
        $region52: #{tpu_custom_call.1} parent=39 // pred_fallthru
          _
      $region40: #{tpu_custom_call.1} parent=5 // pred_fallthru
        _
      %p364 = scmp.le.s32.totalorder 2, %s16
      // Predicated region
      $region53: #{tpu_custom_call.1} parent=5 // pred_check
        %p365 = pneg %p364
      $region54: #{tpu_custom_call.1} parent=5 // pred_check_branch
        %367 = sbr.rel (%p365) target = $region56
      $region55: #{tpu_custom_call.1} parent=5 // pred_region
        %s368 = ssub.s32 %s16, 2
        // Predicated region
        $region57: #{tpu_custom_call.1} parent=55 // pred_check
          %p369 = pneg %p160
        $region58: #{tpu_custom_call.1} parent=55 // pred_check_branch
          %371 = sbr.rel (%p369) target = $region60
        $region59: #{tpu_custom_call.1} parent=55 // pred_region
          %s372 = sand.u32 %s145, 1
          %s373 = scalar_lea.sflag [#allocation4], %s372
          %s374 = sand.u32 %s145, 1
          %s375 = smul.addr %s374, 8
          %s376 = scalar_lea.vmem [#allocation7], %s375
          %377 = dma.done %s373, 128
        $region60: #{tpu_custom_call.1} parent=55 // pred_fallthru
          _
      $region56: #{tpu_custom_call.1} parent=5 // pred_fallthru
        _
    $region6: #{tpu_custom_call.1} parent=1 // loop_footer
      %s20 = sadd.s32 1, %s16
    $region7: #{tpu_custom_call.1} parent=1 // loop_footer_branch
      %15 = sbr.rel target = $region3
    $region8: #{tpu_custom_call.1} parent=1 // loop_exit
      _
    %378 = vsyncpa [#allocation3], 1
    %s379 = scalar_lea.sflag [#allocation3], 1
    %380 = vsyncpa %s379, 1
    %381 = vsyncpa [#allocation6], 1
    %382 = vsyncpa [#allocation4], 1
    %s383 = scalar_lea.sflag [#allocation4], 1
    %384 = vsyncpa %s383, 1

</llo_original>
